<compile_context>
chip_gen: v5e
topology: v5e:2x2
jax: 0.10.0
libtpu: 0.0.40
codegen_flags: <defaults>
</compile_context>

<pallas_src>
import math

import jax
import jax.numpy as jnp
from jax.experimental import pallas as pl
from jax.experimental.pallas import tpu as pltpu

_LANES = 128
_SUBLANES = 8
_MAX_TILE_ROWS = 1024  # 1024x128 f32 block = 512 KiB per input


def _phase_loss_kernel(pred_ref, target_ref, out_ref):
    # Upcast in-register (keeps DMA narrow if the caller feeds bf16/f16).
    d = pred_ref[...].astype(jnp.float32) - target_ref[...].astype(jnp.float32)
    # Pure-VPU phase wrap of d into [-1, 1]; (w*pi)^2 == wrapped_phase^2.
    w = d - 2.0 * jnp.floor(d * 0.5 + 0.5)
    w2 = w * w
    tr = w2.shape[0]
    # Fold the row tile down to one lane-dense (8, 128) partial sum per block.
    # Leading-axis sum is just vreg adds (no cross-lane XLU work, no serial
    # SMEM scalar dependency across grid steps).
    out_ref[...] = jnp.sum(
        w2.reshape(tr // _SUBLANES, _SUBLANES, _LANES), axis=0
    )


def phase_loss(pred, target):
    """Pallas TPU implementation of PhaseLoss.forward. Returns a scalar f32."""
    assert pred.shape == target.shape
    total = pred.size

    pred_f = pred.reshape(-1)
    target_f = target.reshape(-1)

    # Lay the data out as a lane-dense (rows, 128) slab with rows a multiple of
    # the chosen row tile.  For the module's shape (2*4*16*16 = 2048 elems) this
    # is a pure reshape: rows = 16, tile_rows = 16, grid = (1,), no padding.
    row_elems = _SUBLANES * _LANES
    rows = pl.cdiv(total, row_elems) * _SUBLANES          # multiple of 8
    tile_rows = min(rows, _MAX_TILE_ROWS)                 # multiple of 8
    rows = pl.cdiv(rows, tile_rows) * tile_rows
    padded = rows * _LANES
    pad = padded - total
    if pad:
        # Pad both inputs identically: wrapped diff of the tail is exactly 0,
        # so it contributes nothing to the sum; the mean divides by `total`.
        pred_f = jnp.concatenate([pred_f, jnp.zeros((pad,), pred_f.dtype)])
        target_f = jnp.concatenate([target_f, jnp.zeros((pad,), target_f.dtype)])

    pred2d = pred_f.reshape(rows, _LANES)
    target2d = target_f.reshape(rows, _LANES)

    num_blocks = rows // tile_rows

    partials = pl.pallas_call(
        _phase_loss_kernel,
        out_shape=jax.ShapeDtypeStruct((num_blocks * _SUBLANES, _LANES), jnp.float32),
        grid_spec=pltpu.PrefetchScalarGridSpec(
            num_scalar_prefetch=0,
            grid=(num_blocks,),
            in_specs=[
                pl.BlockSpec((tile_rows, _LANES), lambda i: (i, 0)),
                pl.BlockSpec((tile_rows, _LANES), lambda i: (i, 0)),
            ],
            out_specs=pl.BlockSpec((_SUBLANES, _LANES), lambda i: (i, 0)),
        ),
        compiler_params=pltpu.CompilerParams(
            # Blocks produce independent partial sums -> shardable across TCs.
            dimension_semantics=("parallel",),
        ),
    )(pred2d, target2d)

    pi_sq = jnp.float32(math.pi * math.pi)
    return jnp.sum(partials) * pi_sq / jnp.float32(total)


def _phase_loss_ref(pred, target):
    diff = (pred.astype(jnp.float32) - target.astype(jnp.float32)) * jnp.float32(math.pi)
    wrapped = jnp.arctan2(jnp.sin(diff), jnp.cos(diff))
    return jnp.mean(wrapped * wrapped)


if __name__ == "__main__":
    key = jax.random.PRNGKey(0)
    k_pred, k_tgt = jax.random.split(key)

    # NCHW, batch=2, channels=4, spatial=16x16 (PhaseLoss has no params).
    pred = jax.random.uniform(k_pred, (2, 4, 16, 16), jnp.float32, -2.0, 2.0)
    target = jax.random.uniform(k_tgt, (2, 4, 16, 16), jnp.float32, -2.0, 2.0)

    out = jax.block_until_ready(phase_loss(pred, target))
    ref = jax.block_until_ready(_phase_loss_ref(pred, target))

    assert jnp.allclose(out, ref, rtol=1e-5, atol=1e-5), (out, ref)
    print("KERNEL_OK")
</pallas_src>

<mosaic_0001>
module attributes {stable_mosaic.version = 11 : i64} {
  func.func @_phase_loss_kernel(%arg0: i32, %arg1: memref<16x128xf32, #tpu.memory_space<vmem>>, %arg2: memref<16x128xf32, #tpu.memory_space<vmem>>, %arg3: memref<8x128xf32, #tpu.memory_space<vmem>>) attributes {dimension_semantics = [#tpu.dimension_semantics<parallel>], iteration_bounds = array<i64: 1>, scalar_prefetch = 0 : i64, scratch_operands = 0 : i64, tpu.core_type = #tpu.core_type<tc>, window_params = [{transform_indices = @transform_0, window_bounds = array<i64: 16, 128>}, {transform_indices = @transform_1, window_bounds = array<i64: 16, 128>}, {transform_indices = @transform_2, window_bounds = array<i64: 8, 128>}]} {
    %c0 = arith.constant 0 : index
    %c0_0 = arith.constant 0 : index
    %0 = vector.load %arg1[%c0, %c0_0] : memref<16x128xf32, #tpu.memory_space<vmem>>, vector<16x128xf32>
    %c0_1 = arith.constant 0 : index
    %c0_2 = arith.constant 0 : index
    %1 = vector.load %arg2[%c0_1, %c0_2] : memref<16x128xf32, #tpu.memory_space<vmem>>, vector<16x128xf32>
    %2 = arith.subf %0, %1 : vector<16x128xf32>
    %cst = arith.constant 5.000000e-01 : f32
    %3 = vector.broadcast %cst : f32 to vector<16x128xf32>
    %4 = arith.mulf %2, %3 : vector<16x128xf32>
    %cst_3 = arith.constant 5.000000e-01 : f32
    %5 = vector.broadcast %cst_3 : f32 to vector<16x128xf32>
    %6 = arith.addf %4, %5 : vector<16x128xf32>
    %7 = math.floor %6 : vector<16x128xf32>
    %cst_4 = arith.constant 2.000000e+00 : f32
    %8 = vector.broadcast %cst_4 : f32 to vector<16x128xf32>
    %9 = arith.mulf %8, %7 : vector<16x128xf32>
    %10 = arith.subf %2, %9 : vector<16x128xf32>
    %11 = arith.mulf %10, %10 : vector<16x128xf32>
    %12 = vector.shape_cast %11 : vector<16x128xf32> to vector<2x8x128xf32>
    %cst_5 = arith.constant dense<0.000000e+00> : vector<8x128xf32>
    %13 = vector.multi_reduction <add>, %12, %cst_5 [0] : vector<2x8x128xf32> to vector<8x128xf32>
    %c0_6 = arith.constant 0 : index
    %c0_7 = arith.constant 0 : index
    %14 = vector.load %arg3[%c0_6, %c0_7] : memref<8x128xf32, #tpu.memory_space<vmem>>, vector<8x128xf32>
    tpu.vector_store %arg3[%c0_6, %c0_7], %13 {strides = array<i32>} : memref<8x128xf32, #tpu.memory_space<vmem>>, vector<8x128xf32>,
    return
  }
  func.func @transform_0(%arg0: i32) -> (i32, i32) {
    %c0_i32 = arith.constant 0 : i32
    %c0_i32_0 = arith.constant 0 : i32
    return %arg0, %c0_i32 : i32, i32
  }
  func.func @transform_1(%arg0: i32) -> (i32, i32) {
    %c0_i32 = arith.constant 0 : i32
    %c0_i32_0 = arith.constant 0 : i32
    return %arg0, %c0_i32 : i32, i32
  }
  func.func @transform_2(%arg0: i32) -> (i32, i32) {
    %c0_i32 = arith.constant 0 : i32
    %c0_i32_0 = arith.constant 0 : i32
    return %arg0, %c0_i32 : i32, i32
  }
}

</mosaic_0001>

<llo_original>
// kernel: tpu_custom_call.1
$region0: #{tpu_custom_call.1}
  #allocation0 [shape = 'u32[]', space=smem, size = 0x4, offset = 0x4, fixed_abs, tag = 'smem constant byte address 0x4 - core index']
  #allocation1 [shape = 'u32[72,128]{1,0:T(1,128)}', space=vmem, size = 0x9000, scoped, tag = 'internal scratch']
  %s0 = inlined_call_operand.hbm [shape: f32[16,128], index: 0, kind: input, shape index: {}]
  %s1 = inlined_call_operand.hbm [shape: f32[16,128], index: 1, kind: input, shape index: {}]
  %s2 = inlined_call_operand.hbm [shape: f32[8,128], index: 2, kind: output, shape index: {}]
  %s3 = sld [smem:[#allocation0]]
  $region26: #{tpu_custom_call.1} parent=0
    _
  %s5 = ssub.s32 1, %s3
  %s6 = scalar_select 0, %s5, %s3
  $region1: #{tpu_custom_call.1} parent=0
    #allocation2 [shape = 'u8[8192]{0}', space=vmem, size = 0x2000, scoped, tag = 'input window, operand 0, single buffered']
    #allocation3 [shape = 's32[1]{0}', space=sflag, size = 0x4, scoped, tag = 'scoped memory for tpu_custom_call.1']
    #allocation4 [shape = 's32[1]{0}', space=sflag, size = 0x4, scoped, tag = 'scoped memory for tpu_custom_call.1']
    #allocation5 [shape = 'u8[8192]{0}', space=vmem, size = 0x2000, scoped, tag = 'input window, operand 1, single buffered']
    #allocation6 [shape = 's32[1]{0}', space=sflag, size = 0x4, scoped, tag = 'scoped memory for tpu_custom_call.1']
    #allocation7 [shape = 'u8[4096]{0}', space=vmem, size = 0x1000, scoped, tag = 'output window, operand 0, single buffered']
    %7 = vsyncpa [#allocation3], 0
    %8 = vsyncpa [#allocation6], 0
    %9 = vsyncpa [#allocation4], 0
    // Predicated region
    $region2: #{tpu_custom_call.1} parent=1 // pred_check
      _
    $region3: #{tpu_custom_call.1} parent=1 // pred_check_branch
      %11 = sbr.rel (0) target = $region5
    $region4: #{tpu_custom_call.1} parent=1 // pred_region
      %13 = vsyncadd [#allocation3], 0
      %s14 = sshll.u32 %s0, 4
      %s15 = int_to_ptr.hbm [resolvable:$true] %s14
      %s16 = sshll.u32 [#allocation2], 4
      %s17 = int_to_ptr.vmem [resolvable:$true] %s16
      %22 = dma.hbm_to_vmem [thread:$0]  %s15, 256, %s17, [#allocation3], 128, 128, 8
    $region5: #{tpu_custom_call.1} parent=1 // pred_fallthru
      _
    // Predicated region
    $region6: #{tpu_custom_call.1} parent=1 // pred_check
      _
    $region7: #{tpu_custom_call.1} parent=1 // pred_check_branch
      %24 = sbr.rel (0) target = $region9
    $region8: #{tpu_custom_call.1} parent=1 // pred_region
      %26 = vsyncadd [#allocation6], 0
      %s27 = sshll.u32 %s1, 4
      %s28 = int_to_ptr.hbm [resolvable:$true] %s27
      %s29 = sshll.u32 [#allocation5], 4
      %s30 = int_to_ptr.vmem [resolvable:$true] %s29
      %35 = dma.hbm_to_vmem [thread:$0]  %s28, 256, %s30, [#allocation6], 128, 128, 8
    $region9: #{tpu_custom_call.1} parent=1 // pred_fallthru
      _
    // Predicated region
    $region10: #{tpu_custom_call.1} parent=1 // pred_check
      _
    $region11: #{tpu_custom_call.1} parent=1 // pred_check_branch
      %37 = sbr.rel (0) target = $region13
    $region12: #{tpu_custom_call.1} parent=1 // pred_region
      %39 = dma.done [#allocation3], 256
    $region13: #{tpu_custom_call.1} parent=1 // pred_fallthru
      _
    // Predicated region
    $region14: #{tpu_custom_call.1} parent=1 // pred_check
      _
    $region15: #{tpu_custom_call.1} parent=1 // pred_check_branch
      %41 = sbr.rel (0) target = $region17
    $region16: #{tpu_custom_call.1} parent=1 // pred_region
      %43 = dma.done [#allocation6], 256
    $region17: #{tpu_custom_call.1} parent=1 // pred_fallthru
      _
    %v44 = vld [vmem:[#allocation2] sm:$0xff]
    %v45 = vld [vmem:[#allocation2 + $0x8] sm:$0xff]
    %v46 = vld [vmem:[#allocation5] sm:$0xff]
    %v47 = vld [vmem:[#allocation5 + $0x8] sm:$0xff]
    %v48 = vsub.f32 %v44, %v46
    %v49 = vsub.f32 %v45, %v47
    %v50 = vmul.f32 %v48, 0.5
    %v51 = vmul.f32 %v49, 0.5
    %v52 = vadd.f32 %v50, 0.5
    %v53 = vadd.f32 %v51, 0.5
    %v54 = vfloor.f32 %v52
    %v55 = vfloor.f32 %v53
    %v56 = vmul.f32 %v54, 2.0
    %v57 = vmul.f32 %v55, 2.0
    %v58 = vsub.f32 %v48, %v56
    %v59 = vsub.f32 %v49, %v57
    %v60 = vmul.f32 %v58, %v58
    %v61 = vmul.f32 %v59, %v59
    %v62 = vadd.f32 %v60, %v61
    %63 = vst [vmem:[#allocation7] sm:$0xff] %v62
    // Predicated region
    $region18: #{tpu_custom_call.1} parent=1 // pred_check
      _
    $region19: #{tpu_custom_call.1} parent=1 // pred_check_branch
      %65 = sbr.rel (0) target = $region21
    $region20: #{tpu_custom_call.1} parent=1 // pred_region
      %67 = vsyncadd [#allocation4], 0
      %s69 = sshll.u32 [#allocation7], 4
      %s70 = int_to_ptr.vmem [resolvable:$true] %s69
      %s71 = sshll.u32 %s2, 4
      %s72 = int_to_ptr.hbm [resolvable:$true] %s71
      %74 = dma.vmem_to_hbm [thread:$0]  %s70, 128, %s72, [#allocation4]
    $region21: #{tpu_custom_call.1} parent=1 // pred_fallthru
      _
    // Predicated region
    $region22: #{tpu_custom_call.1} parent=1 // pred_check
      _
    $region23: #{tpu_custom_call.1} parent=1 // pred_check_branch
      %76 = sbr.rel (0) target = $region25
    $region24: #{tpu_custom_call.1} parent=1 // pred_region
      %78 = dma.done [#allocation4], 128
    $region25: #{tpu_custom_call.1} parent=1 // pred_fallthru
      _
    %79 = vsyncpa [#allocation3], 1
    %80 = vsyncpa [#allocation6], 1
    %81 = vsyncpa [#allocation4], 1

</llo_original>
